<compile_context>
chip_gen: v6e
topology: v6e:2x2x1
jax: 0.10.0
libtpu: 0.0.40
codegen_flags: <defaults>
</compile_context>

<pallas_src>
import jax
import jax.numpy as jnp
from jax import lax
from jax.experimental import pallas as pl
from jax.experimental.pallas import tpu as pltpu

NUM_ENC = 6
D_IN = 3 + 3 * 2 * NUM_ENC   # 39  (kept unpadded; full-dim block is legal)
FILTER = 128
D_OUT = 4
D_OUT_PAD = 8                # sublane-dense padded output feature dim (full 8-sublane tile)


def _round_up(v, m):
    return ((v + m - 1) // m) * m


def _pick_tile_n(n, tile_n):
    # Clamp so small batches don't allocate a giant mostly-padded block, and keep at
    # least 2 grid steps when possible so v7x's two TensorCores both get work.
    t = min(int(tile_n), _round_up(max(n, 1), 256))
    if n > 512:
        t = min(t, _round_up((n + 1) // 2, 256))
    return max(256, _round_up(t, 256))


def nerf_kernel(x_ref, w1_ref, b1_ref, w2_ref, b2_ref, w3t_ref, b3t_ref, o_ref):
    # Fused 3-layer MLP. All matmuls: bf16 operands on the MXU, f32 accumulation.
    # Bias + ReLU epilogue stays f32 on the VPU (v5e-safe).
    x = x_ref[...].astype(jnp.bfloat16)                                   # (tile_n, 39)
    h1 = jnp.dot(x, w1_ref[...], preferred_element_type=jnp.float32) + b1_ref[...]
    h1 = jnp.maximum(h1, 0.0)
    h2 = jnp.dot(h1.astype(jnp.bfloat16), w2_ref[...],
                 preferred_element_type=jnp.float32) + b2_ref[...]
    h2 = jnp.maximum(h2, 0.0)                                             # (tile_n, 128) f32
    # out_t[o, n] = sum_k w3t[o, k] * h2[n, k]   (NT contraction -> (8, tile_n), lane-dense)
    out_t = lax.dot_general(w3t_ref[...], h2.astype(jnp.bfloat16),
                            (((1,), (1,)), ((), ())),
                            preferred_element_type=jnp.float32)
    o_ref[...] = (out_t + b3t_ref[...]).astype(o_ref.dtype)


def prepare_params(params):
    """One-time (outside the hot path) layout/dtype prep of the tiny weights:
    bf16 weights for the MXU, f32 biases, layer-3 weight transposed + padded to 8 rows."""
    w1, b1, w2, b2, w3, b3 = params
    w1b = w1.astype(jnp.bfloat16)                                         # (39, 128)
    w2b = w2.astype(jnp.bfloat16)                                         # (128, 128)
    w3t = jnp.zeros((D_OUT_PAD, FILTER), jnp.bfloat16).at[:D_OUT, :].set(
        w3.T.astype(jnp.bfloat16))                                        # (8, 128)
    b1f = b1.astype(jnp.float32).reshape(1, FILTER)
    b2f = b2.astype(jnp.float32).reshape(1, FILTER)
    b3t = jnp.zeros((D_OUT_PAD, 1), jnp.float32).at[:D_OUT, 0].set(
        b3.astype(jnp.float32).reshape(D_OUT))
    return (w1b, b1f, w2b, b2f, w3t, b3t)


def very_tiny_nerf_forward(x, prepared_params, *, tile_n=2048):
    """x: [N, 39] float32. prepared_params from prepare_params(). Returns [N, 4] float32."""
    w1b, b1f, w2b, b2f, w3t, b3t = prepared_params
    N = x.shape[0]
    assert x.shape[1] == D_IN

    tile_n = _pick_tile_n(N, tile_n)
    n_tiles = pl.cdiv(N, tile_n)          # ragged batch -> partial boundary block, no pad copy

    def full(shape):
        zeros = (0,) * len(shape)
        return pl.BlockSpec(shape, lambda i: zeros)

    flops = 2 * N * (D_IN * FILTER + FILTER * FILTER + FILTER * D_OUT)
    bytes_accessed = (N * D_IN * 4                      # x read (f32, unpadded)
                      + D_OUT_PAD * N * 4               # transposed output write
                      + (w1b.size + w2b.size + w3t.size) * 2
                      + (b1f.size + b2f.size + b3t.size) * 4)

    # v5e's default scoped-VMEM budget is 16 MiB; raise it only when a big tile needs it.
    vmem_est = (tile_n * FILTER * 4 * 2          # x block (lane-padded to 128), double-buffered
                + tile_n * FILTER * (4 + 2) * 2  # h1/h2 f32 + bf16 copies
                + D_OUT_PAD * tile_n * 4 * 2     # output block, double-buffered
                + (2 << 20))                     # weights + slack
    vmem_limit = None
    if vmem_est > 14 * 1024 * 1024:
        vmem_limit = min(int(1.5 * vmem_est), 48 * 1024 * 1024)

    out_t = pl.pallas_call(
        nerf_kernel,
        out_shape=jax.ShapeDtypeStruct((D_OUT_PAD, N), jnp.float32),
        grid_spec=pltpu.PrefetchScalarGridSpec(
            num_scalar_prefetch=0,
            grid=(n_tiles,),
            in_specs=[
                pl.BlockSpec((tile_n, D_IN), lambda i: (i, 0)),   # x tile (unpadded f32)
                full((D_IN, FILTER)),                             # w1 (resident)
                full((1, FILTER)),                                # b1
                full((FILTER, FILTER)),                           # w2 (resident)
                full((1, FILTER)),                                # b2
                full((D_OUT_PAD, FILTER)),                        # w3^T (padded, resident)
                full((D_OUT_PAD, 1)),                             # b3^T (padded)
            ],
            out_specs=pl.BlockSpec((D_OUT_PAD, tile_n), lambda i: (0, i)),
        ),
        compiler_params=pltpu.CompilerParams(
            # single batch axis is "parallel" -> shards across the 2 TensorCores on v7x
            dimension_semantics=("parallel",),
            vmem_limit_bytes=vmem_limit),
        cost_estimate=pl.CostEstimate(
            flops=flops, transcendentals=0, bytes_accessed=bytes_accessed),
    )(x, w1b, b1f, w2b, b2f, w3t, b3t)

    # Un-pack the lane-dense transposed output: (8, N) -> (N, 4). Tiny XLA transpose.
    return out_t[:D_OUT, :].T


def init_params(key):
    """Deterministic init matching torch.nn.Linear shapes (stored transposed: [in, out])."""
    k1, k2, k3, k4, k5, k6 = jax.random.split(key, 6)

    def uniform(k, shape, fan_in):
        bound = 1.0 / jnp.sqrt(fan_in)
        return jax.random.uniform(k, shape, jnp.float32, -bound, bound)

    w1 = uniform(k1, (D_IN, FILTER), D_IN)
    b1 = uniform(k2, (1, FILTER), D_IN)
    w2 = uniform(k3, (FILTER, FILTER), FILTER)
    b2 = uniform(k4, (1, FILTER), FILTER)
    w3 = uniform(k5, (FILTER, D_OUT), FILTER)
    b3 = uniform(k6, (1, D_OUT), FILTER)
    return (w1, b1, w2, b2, w3, b3)


def reference_forward(x, params):
    # Matches kernel numerics: bf16 operands / f32 accumulation for all three layers.
    w1, b1, w2, b2, w3, b3 = params
    bf = jnp.bfloat16
    h1 = jnp.maximum(
        jnp.dot(x.astype(bf), w1.astype(bf), preferred_element_type=jnp.float32) + b1, 0.0)
    h2 = jnp.maximum(
        jnp.dot(h1.astype(bf), w2.astype(bf), preferred_element_type=jnp.float32) + b2, 0.0)
    return jnp.dot(h2.astype(bf), w3.astype(bf), preferred_element_type=jnp.float32) + b3


if __name__ == "__main__":
    key = jax.random.PRNGKey(0)
    kx, kp = jax.random.split(key)

    N = 200  # ragged vs the 256-aligned tile -> exercises the partial-block / masked-store path
    x = jax.random.normal(kx, (N, D_IN), dtype=jnp.float32)
    params = init_params(kp)
    prepped = prepare_params(params)   # one-time weight prep, outside the hot path

    out = very_tiny_nerf_forward(x, prepped, tile_n=2048)
    out = jax.block_until_ready(out)

    ref = reference_forward(x, params)
    assert out.shape == (N, D_OUT)
    assert jnp.allclose(out, ref, atol=2e-2, rtol=2e-2), "mismatch vs reference"

    # TODO(synk): DFA/SHALLOW feedback-alignment branches of the PyTorch module are
    # training-time constructs and are not implemented; only the BP forward is.
    print("KERNEL_OK")
</pallas_src>

<mosaic_0001>
module attributes {stable_mosaic.version = 11 : i64} {
  func.func @nerf_kernel(%arg0: i32, %arg1: memref<256x39xf32, #tpu.memory_space<vmem>>, %arg2: memref<39x128xbf16, #tpu.memory_space<vmem>>, %arg3: memref<1x128xf32, #tpu.memory_space<vmem>>, %arg4: memref<128x128xbf16, #tpu.memory_space<vmem>>, %arg5: memref<1x128xf32, #tpu.memory_space<vmem>>, %arg6: memref<8x128xbf16, #tpu.memory_space<vmem>>, %arg7: memref<8x1xf32, #tpu.memory_space<vmem>>, %arg8: memref<8x256xf32, #tpu.memory_space<vmem>>) attributes {dimension_semantics = [#tpu.dimension_semantics<parallel>], iteration_bounds = array<i64: 1>, scalar_prefetch = 0 : i64, scratch_operands = 0 : i64, tpu.core_type = #tpu.core_type<tc>, window_params = [{transform_indices = @transform_0, window_bounds = array<i64: 256, 39>}, {pipeline_mode = #tpu.pipeline_mode<synchronous>, transform_indices = @transform_1, window_bounds = array<i64: 39, 128>}, {pipeline_mode = #tpu.pipeline_mode<synchronous>, transform_indices = @transform_2, window_bounds = array<i64: 1, 128>}, {pipeline_mode = #tpu.pipeline_mode<synchronous>, transform_indices = @transform_3, window_bounds = array<i64: 128, 128>}, {pipeline_mode = #tpu.pipeline_mode<synchronous>, transform_indices = @transform_4, window_bounds = array<i64: 1, 128>}, {pipeline_mode = #tpu.pipeline_mode<synchronous>, transform_indices = @transform_5, window_bounds = array<i64: 8, 128>}, {pipeline_mode = #tpu.pipeline_mode<synchronous>, transform_indices = @transform_6, window_bounds = array<i64: 8, 1>}, {transform_indices = @transform_7, window_bounds = array<i64: 8, 256>}]} {
    %c0 = arith.constant 0 : index
    %c0_0 = arith.constant 0 : index
    %0 = vector.load %arg1[%c0, %c0_0] : memref<256x39xf32, #tpu.memory_space<vmem>>, vector<256x39xf32>
    %1 = arith.truncf %0 : vector<256x39xf32> to vector<256x39xbf16>
    %c0_1 = arith.constant 0 : index
    %c0_2 = arith.constant 0 : index
    %2 = vector.load %arg2[%c0_1, %c0_2] : memref<39x128xbf16, #tpu.memory_space<vmem>>, vector<39x128xbf16>
    %cst = arith.constant dense<0.000000e+00> : vector<256x128xf32>
    %3 = tpu.matmul %1, %2, %cst {dimension_numbers = #tpu.dot_dimension_numbers<[1], [0], [0], [1], [0, 0, 1, 1], [], []>} : vector<256x39xbf16>, vector<39x128xbf16>, vector<256x128xf32> -> vector<256x128xf32>
    %c0_3 = arith.constant 0 : index
    %c0_4 = arith.constant 0 : index
    %4 = vector.load %arg3[%c0_3, %c0_4] : memref<1x128xf32, #tpu.memory_space<vmem>>, vector<1x128xf32>
    %5 = vector.broadcast %4 : vector<1x128xf32> to vector<256x128xf32>
    %6 = arith.addf %3, %5 : vector<256x128xf32>
    %cst_5 = arith.constant 0.000000e+00 : f32
    %7 = vector.broadcast %cst_5 : f32 to vector<256x128xf32>
    %8 = arith.maximumf %6, %7 : vector<256x128xf32>
    %9 = arith.truncf %8 : vector<256x128xf32> to vector<256x128xbf16>
    %c0_6 = arith.constant 0 : index
    %c0_7 = arith.constant 0 : index
    %10 = vector.load %arg4[%c0_6, %c0_7] : memref<128x128xbf16, #tpu.memory_space<vmem>>, vector<128x128xbf16>
    %cst_8 = arith.constant dense<0.000000e+00> : vector<256x128xf32>
    %11 = tpu.matmul %9, %10, %cst_8 {dimension_numbers = #tpu.dot_dimension_numbers<[1], [0], [0], [1], [0, 0, 1, 1], [], []>} : vector<256x128xbf16>, vector<128x128xbf16>, vector<256x128xf32> -> vector<256x128xf32>
    %c0_9 = arith.constant 0 : index
    %c0_10 = arith.constant 0 : index
    %12 = vector.load %arg5[%c0_9, %c0_10] : memref<1x128xf32, #tpu.memory_space<vmem>>, vector<1x128xf32>
    %13 = vector.broadcast %12 : vector<1x128xf32> to vector<256x128xf32>
    %14 = arith.addf %11, %13 : vector<256x128xf32>
    %cst_11 = arith.constant 0.000000e+00 : f32
    %15 = vector.broadcast %cst_11 : f32 to vector<256x128xf32>
    %16 = arith.maximumf %14, %15 : vector<256x128xf32>
    %c0_12 = arith.constant 0 : index
    %c0_13 = arith.constant 0 : index
    %17 = vector.load %arg6[%c0_12, %c0_13] : memref<8x128xbf16, #tpu.memory_space<vmem>>, vector<8x128xbf16>
    %18 = arith.truncf %16 : vector<256x128xf32> to vector<256x128xbf16>
    %cst_14 = arith.constant dense<0.000000e+00> : vector<8x256xf32>
    %19 = tpu.matmul %17, %18, %cst_14 {dimension_numbers = #tpu.dot_dimension_numbers<[1], [1], [0], [0], [0, 0, 1, 0], [], []>} : vector<8x128xbf16>, vector<256x128xbf16>, vector<8x256xf32> -> vector<8x256xf32>
    %c0_15 = arith.constant 0 : index
    %c0_16 = arith.constant 0 : index
    %20 = vector.load %arg7[%c0_15, %c0_16] : memref<8x1xf32, #tpu.memory_space<vmem>>, vector<8x1xf32>
    %21 = vector.broadcast %20 : vector<8x1xf32> to vector<8x256xf32>
    %22 = arith.addf %19, %21 : vector<8x256xf32>
    %c0_17 = arith.constant 0 : index
    %c0_18 = arith.constant 0 : index
    %23 = vector.load %arg8[%c0_17, %c0_18] : memref<8x256xf32, #tpu.memory_space<vmem>>, vector<8x256xf32>
    tpu.vector_store %arg8[%c0_17, %c0_18], %22 {strides = array<i32>} : memref<8x256xf32, #tpu.memory_space<vmem>>, vector<8x256xf32>,
    return
  }
  func.func @transform_0(%arg0: i32) -> (i32, i32) {
    %c0_i32 = arith.constant 0 : i32
    %c0_i32_0 = arith.constant 0 : i32
    return %arg0, %c0_i32 : i32, i32
  }
  func.func @transform_1(%arg0: i32) -> (i32, i32) {
    %c0_i32 = arith.constant 0 : i32
    %c0_i32_0 = arith.constant 0 : i32
    %c0_i32_1 = arith.constant 0 : i32
    return %c0_i32, %c0_i32_0 : i32, i32
  }
  func.func @transform_2(%arg0: i32) -> (i32, i32) {
    %c0_i32 = arith.constant 0 : i32
    %c0_i32_0 = arith.constant 0 : i32
    %c0_i32_1 = arith.constant 0 : i32
    return %c0_i32, %c0_i32_0 : i32, i32
  }
  func.func @transform_3(%arg0: i32) -> (i32, i32) {
    %c0_i32 = arith.constant 0 : i32
    %c0_i32_0 = arith.constant 0 : i32
    %c0_i32_1 = arith.constant 0 : i32
    return %c0_i32, %c0_i32_0 : i32, i32
  }
  func.func @transform_4(%arg0: i32) -> (i32, i32) {
    %c0_i32 = arith.constant 0 : i32
    %c0_i32_0 = arith.constant 0 : i32
    %c0_i32_1 = arith.constant 0 : i32
    return %c0_i32, %c0_i32_0 : i32, i32
  }
  func.func @transform_5(%arg0: i32) -> (i32, i32) {
    %c0_i32 = arith.constant 0 : i32
    %c0_i32_0 = arith.constant 0 : i32
    %c0_i32_1 = arith.constant 0 : i32
    return %c0_i32, %c0_i32_0 : i32, i32
  }
  func.func @transform_6(%arg0: i32) -> (i32, i32) {
    %c0_i32 = arith.constant 0 : i32
    %c0_i32_0 = arith.constant 0 : i32
    %c0_i32_1 = arith.constant 0 : i32
    return %c0_i32, %c0_i32_0 : i32, i32
  }
  func.func @transform_7(%arg0: i32) -> (i32, i32) {
    %c0_i32 = arith.constant 0 : i32
    %c0_i32_0 = arith.constant 0 : i32
    return %c0_i32, %arg0 : i32, i32
  }
}

</mosaic_0001>

<llo_original>
// kernel: tpu_custom_call.1
$region0: #{tpu_custom_call.1}
  #allocation0 [shape = 'u32[]', space=smem, size = 0x4, offset = 0x4, fixed_abs, tag = 'smem constant byte address 0x4 - core index']
  #allocation1 [shape = 'u32[144,128]{1,0:T(1,128)}', space=vmem, size = 0x12000, scoped, tag = 'internal scratch']
  %s0 = inlined_call_operand.vmem [shape: f32[200,39], index: 0, kind: input, shape index: {}]
  %s1 = inlined_call_operand.vmem [shape: bf16[39,128], index: 1, kind: input, shape index: {}]
  %s2 = inlined_call_operand.vmem [shape: f32[1,128], index: 2, kind: input, shape index: {}]
  %s3 = inlined_call_operand.vmem [shape: bf16[128,128], index: 3, kind: input, shape index: {}]
  %s4 = inlined_call_operand.vmem [shape: f32[1,128], index: 4, kind: input, shape index: {}]
  %s5 = inlined_call_operand.vmem [shape: bf16[8,128], index: 5, kind: input, shape index: {}]
  %s6 = inlined_call_operand.vmem [shape: f32[8,1], index: 6, kind: input, shape index: {}]
  %s7 = inlined_call_operand.hbm [shape: f32[8,200], index: 7, kind: output, shape index: {}]
  %s8 = sld [smem:[#allocation0]]
  $region38: #{tpu_custom_call.1} parent=0
    _
  %s10 = ssub.s32 1, %s8
  %s11 = scalar_select 0, %s10, %s8
  $region1: #{tpu_custom_call.1} parent=0
    #allocation2 [shape = 'u8[8192]{0}', space=vmem, size = 0x2000, scoped, tag = 'output window, operand 0, single buffered']
    #allocation3 [shape = 's32[1]{0}', space=sflag, size = 0x4, scoped, tag = 'scoped memory for tpu_custom_call.1']
    %12 = vsyncpa [#allocation3], 0
    // Predicated region
    $region2: #{tpu_custom_call.1} parent=1 // pred_check
      _
    $region3: #{tpu_custom_call.1} parent=1 // pred_check_branch
      %14 = sbr.rel (0) target = $region5
    $region4: #{tpu_custom_call.1} parent=1 // pred_region
      _
    $region5: #{tpu_custom_call.1} parent=1 // pred_fallthru
      _
    // Predicated region
    $region6: #{tpu_custom_call.1} parent=1 // pred_check
      _
    $region7: #{tpu_custom_call.1} parent=1 // pred_check_branch
      %16 = sbr.rel (0) target = $region9
    $region8: #{tpu_custom_call.1} parent=1 // pred_region
      _
    $region9: #{tpu_custom_call.1} parent=1 // pred_fallthru
      _
    // Predicated region
    $region10: #{tpu_custom_call.1} parent=1 // pred_check
      _
    $region11: #{tpu_custom_call.1} parent=1 // pred_check_branch
      %18 = sbr.rel (0) target = $region13
    $region12: #{tpu_custom_call.1} parent=1 // pred_region
      _
    $region13: #{tpu_custom_call.1} parent=1 // pred_fallthru
      _
    // Predicated region
    $region14: #{tpu_custom_call.1} parent=1 // pred_check
      _
    $region15: #{tpu_custom_call.1} parent=1 // pred_check_branch
      %20 = sbr.rel (0) target = $region17
    $region16: #{tpu_custom_call.1} parent=1 // pred_region
      _
    $region17: #{tpu_custom_call.1} parent=1 // pred_fallthru
      _
    // Predicated region
    $region18: #{tpu_custom_call.1} parent=1 // pred_check
      _
    $region19: #{tpu_custom_call.1} parent=1 // pred_check_branch
      %22 = sbr.rel (0) target = $region21
    $region20: #{tpu_custom_call.1} parent=1 // pred_region
      _
    $region21: #{tpu_custom_call.1} parent=1 // pred_fallthru
      _
    // Predicated region
    $region22: #{tpu_custom_call.1} parent=1 // pred_check
      _
    $region23: #{tpu_custom_call.1} parent=1 // pred_check_branch
      %24 = sbr.rel (0) target = $region25
    $region24: #{tpu_custom_call.1} parent=1 // pred_region
      _
    $region25: #{tpu_custom_call.1} parent=1 // pred_fallthru
      _
    // Predicated region
    $region26: #{tpu_custom_call.1} parent=1 // pred_check
      _
    $region27: #{tpu_custom_call.1} parent=1 // pred_check_branch
      %26 = sbr.rel (0) target = $region29
    $region28: #{tpu_custom_call.1} parent=1 // pred_region
      _
    $region29: #{tpu_custom_call.1} parent=1 // pred_fallthru
      _
    %v28 = vld [vmem:[%s0] sm:$0xff]
    %v29 = vld [vmem:[%s0 + $0x8] sm:$0xff]
    %v30 = vld [vmem:[%s0 + $0x10] sm:$0xff]
    %v31 = vld [vmem:[%s0 + $0x18] sm:$0xff]
    %v32 = vld [vmem:[%s0 + $0x20] sm:$0xff]
    %v33 = vld [vmem:[%s0 + $0x28] sm:$0xff]
    %v34 = vld [vmem:[%s0 + $0x30] sm:$0xff]
    %v35 = vld [vmem:[%s0 + $0x38] sm:$0xff]
    %v36 = vld [vmem:[%s0 + $0x40] sm:$0xff]
    %v37 = vld [vmem:[%s0 + $0x48] sm:$0xff]
    %v38 = vld [vmem:[%s0 + $0x50] sm:$0xff]
    %v39 = vld [vmem:[%s0 + $0x58] sm:$0xff]
    %v40 = vld [vmem:[%s0 + $0x60] sm:$0xff]
    %v41 = vld [vmem:[%s0 + $0x68] sm:$0xff]
    %v42 = vld [vmem:[%s0 + $0x70] sm:$0xff]
    %v43 = vld [vmem:[%s0 + $0x78] sm:$0xff]
    %v44 = vld [vmem:[%s0 + $0x80] sm:$0xff]
    %v45 = vld [vmem:[%s0 + $0x88] sm:$0xff]
    %v46 = vld [vmem:[%s0 + $0x90] sm:$0xff]
    %v47 = vld [vmem:[%s0 + $0x98] sm:$0xff]
    %v48 = vld [vmem:[%s0 + $0xa0] sm:$0xff]
    %v49 = vld [vmem:[%s0 + $0xa8] sm:$0xff]
    %v50 = vld [vmem:[%s0 + $0xb0] sm:$0xff]
    %v51 = vld [vmem:[%s0 + $0xb8] sm:$0xff]
    %v52 = vld [vmem:[%s0 + $0xc0] sm:$0xff]
    %v53 = vld [vmem:[%s0 + $0xc8] sm:$0xff]
    %v54 = vld [vmem:[%s0 + $0xd0] sm:$0xff]
    %v55 = vld [vmem:[%s0 + $0xd8] sm:$0xff]
    %v56 = vld [vmem:[%s0 + $0xe0] sm:$0xff]
    %v57 = vld [vmem:[%s0 + $0xe8] sm:$0xff]
    %v58 = vld [vmem:[%s0 + $0xf0] sm:$0xff]
    %v59 = vld [vmem:[%s0 + $0xf8] sm:$0xff]
    %v60 = vpack.c.bf16 %v29, %v28
    %v61 = vpack.c.bf16 %v31, %v30
    %v62 = vpack.c.bf16 %v33, %v32
    %v63 = vpack.c.bf16 %v35, %v34
    %v64 = vpack.c.bf16 %v37, %v36
    %v65 = vpack.c.bf16 %v39, %v38
    %v66 = vpack.c.bf16 %v41, %v40
    %v67 = vpack.c.bf16 %v43, %v42
    %v68 = vpack.c.bf16 %v45, %v44
    %v69 = vpack.c.bf16 %v47, %v46
    %v70 = vpack.c.bf16 %v49, %v48
    %v71 = vpack.c.bf16 %v51, %v50
    %v72 = vpack.c.bf16 %v53, %v52
    %v73 = vpack.c.bf16 %v55, %v54
    %v74 = vpack.c.bf16 %v57, %v56
    %v75 = vpack.c.bf16 %v59, %v58
    %v76 = vld [vmem:[%s1] sm:$0xf]
    %v77 = vld [vmem:[%s1 + $0x4] sm:$0xf]
    %v78 = vld [vmem:[%s1 + $0x8] sm:$0xf]
    %v79 = vld [vmem:[%s1 + $0xc] sm:$0xf]
    %v80 = vld [vmem:[%s1 + $0x10] sm:$0xf]
    %v81 = vld [vmem:[%s2] sm:$0x1]
    %v83 = vlaneseq
    %v84 = vshrl.u32 %v83, 7
    %v85 = vsub.s32 0, %v84
    %v86 = vrot.slane %v81, %v85
    %v93 = vunpack.c.l.b16 %v76
    %v94 = vunpack.c.l.b16 %v77
    %v95 = vunpack.c.l.b16 %v78
    %v96 = vunpack.c.l.b16 %v79
    %v97 = vunpack.c.l.b16 %v80
    %v98 = vpack.c.b16 %v94, %v93
    %v99 = vpack.c.b16 %v96, %v95
    %v100 = vpack.c.b16 %v97, %v97
    %vm103 = vcmask 318464
    %v105 = vsel %vm103, %v60, 0
    %v108 = vsel %vm103, %v61, 0
    %v111 = vsel %vm103, %v62, 0
    %v114 = vsel %vm103, %v63, 0
    %v117 = vsel %vm103, %v64, 0
    %v120 = vsel %vm103, %v65, 0
    %v123 = vsel %vm103, %v66, 0
    %v126 = vsel %vm103, %v67, 0
    %v129 = vsel %vm103, %v68, 0
    %v132 = vsel %vm103, %v69, 0
    %v135 = vsel %vm103, %v70, 0
    %v138 = vsel %vm103, %v71, 0
    %v141 = vsel %vm103, %v72, 0
    %v144 = vsel %vm103, %v73, 0
    %v147 = vsel %vm103, %v74, 0
    %v150 = vsel %vm103, %v75, 0
    %vm152 = vcmask 1042432
    %vm153 = vcmask 1043456
    %v154 = vsel %vm152, 4294967295, 65535
    %v155 = vsel %vm153, %v154, 0
    %v157 = vand.u32 %v100, %v155
    %159 = vmatprep.subr.bf16.mxu0 0
    %160 = vmatpush1.bf16.msra.mxu0 0
    %161 = vmatprep.subr.bf16.mxu0 0
    %162 = vmatpush1.bf16.msra.mxu0 0
    %163 = vmatprep.subr.bf16.mxu0 0
    %164 = vmatpush1.bf16.msra.mxu0 0
    %165 = vmatprep.subr.bf16.mxu0 0
    %166 = vmatpush1.bf16.msra.mxu0 0
    %167 = vmatprep.subr.bf16.mxu0 0
    %168 = vmatpush1.bf16.msra.mxu0 0
    %169 = vmatprep.subr.bf16.mxu0 0
    %170 = vmatpush1.bf16.msra.mxu0 %v157
    %171 = vmatprep.subr.bf16.mxu0 0
    %172 = vmatpush1.bf16.msra.mxu0 %v99
    %173 = vmatprep.subr.bf16.mxu0 0
    %174 = vmatpush1.bf16.msra.mxu0 %v98
    %175 = vmatprep.subr.bf16.mxu0 0
    %176 = vmatpush2.bf16.msra.mxu0 0
    %177 = vmatprep.subr.bf16.mxu0 0
    %178 = vmatpush2.bf16.msra.mxu0 0
    %179 = vmatprep.subr.bf16.mxu0 0
    %180 = vmatpush2.bf16.msra.mxu0 0
    %181 = vmatprep.subr.bf16.mxu0 0
    %182 = vmatpush2.bf16.msra.mxu0 0
    %183 = vmatprep.subr.bf16.mxu0 0
    %184 = vmatpush2.bf16.msra.mxu0 0
    %185 = vmatprep.subr.bf16.mxu0 0
    %186 = vmatpush2.bf16.msra.mxu0 0
    %187 = vmatprep.subr.bf16.mxu0 0
    %188 = vmatpush2.bf16.msra.mxu0 0
    %189 = vmatprep.subr.bf16.mxu0 0
    %190 = vmatpush2.bf16.msra.mxu0 0
    %191 = vmatprep.mubr.bf16.mxu0 0
    %192 = vmatmul.mubr.bf16.gmra.mxu0 %v105
    %v193 = vpop.f32.mrf.mxu0
    %v194 = vadd.f32 %v86, %v193
    %v195 = vpop.f32.mrf.mxu0
    %v196 = vpop.f32.mrf.mxu0
    %v197 = vadd.f32 %v86, %v196
    %v198 = vpop.f32.mrf.mxu0
    %199 = vmatprep.mubr.bf16.mxu0 0
    %200 = vmatmul.mubr.bf16.gmra.mxu0 %v108
    %v201 = vpop.f32.mrf.mxu0
    %v202 = vadd.f32 %v86, %v201
    %v203 = vpop.f32.mrf.mxu0
    %v204 = vpop.f32.mrf.mxu0
    %v205 = vadd.f32 %v86, %v204
    %v206 = vpop.f32.mrf.mxu0
    %207 = vmatprep.mubr.bf16.mxu0 0
    %208 = vmatmul.mubr.bf16.gmra.mxu0 %v111
    %v209 = vpop.f32.mrf.mxu0
    %v210 = vadd.f32 %v86, %v209
    %v211 = vpop.f32.mrf.mxu0
    %v212 = vpop.f32.mrf.mxu0
    %v213 = vadd.f32 %v86, %v212
    %v214 = vpop.f32.mrf.mxu0
    %215 = vmatprep.mubr.bf16.mxu0 0
    %216 = vmatmul.mubr.bf16.gmra.mxu0 %v114
    %v217 = vpop.f32.mrf.mxu0
    %v218 = vadd.f32 %v86, %v217
    %v219 = vpop.f32.mrf.mxu0
    %v220 = vpop.f32.mrf.mxu0
    %v221 = vadd.f32 %v86, %v220
    %v222 = vpop.f32.mrf.mxu0
    %223 = vmatprep.mubr.bf16.mxu0 0
    %224 = vmatmul.mubr.bf16.gmra.mxu0 %v117
    %v225 = vpop.f32.mrf.mxu0
    %v226 = vadd.f32 %v86, %v225
    %v227 = vpop.f32.mrf.mxu0
    %v228 = vpop.f32.mrf.mxu0
    %v229 = vadd.f32 %v86, %v228
    %v230 = vpop.f32.mrf.mxu0
    %231 = vmatprep.mubr.bf16.mxu0 0
    %232 = vmatmul.mubr.bf16.gmra.mxu0 %v120
    %v233 = vpop.f32.mrf.mxu0
    %v234 = vadd.f32 %v86, %v233
    %v235 = vpop.f32.mrf.mxu0
    %v236 = vpop.f32.mrf.mxu0
    %v237 = vadd.f32 %v86, %v236
    %v238 = vpop.f32.mrf.mxu0
    %239 = vmatprep.mubr.bf16.mxu0 0
    %240 = vmatmul.mubr.bf16.gmra.mxu0 %v123
    %v241 = vpop.f32.mrf.mxu0
    %v242 = vadd.f32 %v86, %v241
    %v243 = vpop.f32.mrf.mxu0
    %v244 = vpop.f32.mrf.mxu0
    %v245 = vadd.f32 %v86, %v244
    %v246 = vpop.f32.mrf.mxu0
    %247 = vmatprep.mubr.bf16.mxu0 0
    %248 = vmatmul.mubr.bf16.gmra.mxu0 %v126
    %v249 = vpop.f32.mrf.mxu0
    %v250 = vadd.f32 %v86, %v249
    %v251 = vpop.f32.mrf.mxu0
    %v252 = vpop.f32.mrf.mxu0
    %v253 = vadd.f32 %v86, %v252
    %v254 = vpop.f32.mrf.mxu0
    %255 = vmatprep.mubr.bf16.mxu0 0
    %256 = vmatmul.mubr.bf16.gmra.mxu0 %v129
    %v257 = vpop.f32.mrf.mxu0
    %v258 = vadd.f32 %v86, %v257
    %v259 = vpop.f32.mrf.mxu0
    %v260 = vpop.f32.mrf.mxu0
    %v261 = vadd.f32 %v86, %v260
    %v262 = vpop.f32.mrf.mxu0
    %263 = vmatprep.mubr.bf16.mxu0 0
    %264 = vmatmul.mubr.bf16.gmra.mxu0 %v132
    %v265 = vpop.f32.mrf.mxu0
    %v266 = vadd.f32 %v86, %v265
    %v267 = vpop.f32.mrf.mxu0
    %v268 = vpop.f32.mrf.mxu0
    %v269 = vadd.f32 %v86, %v268
    %v270 = vpop.f32.mrf.mxu0
    %271 = vmatprep.mubr.bf16.mxu0 0
    %272 = vmatmul.mubr.bf16.gmra.mxu0 %v135
    %v273 = vpop.f32.mrf.mxu0
    %v274 = vadd.f32 %v86, %v273
    %v275 = vpop.f32.mrf.mxu0
    %v276 = vpop.f32.mrf.mxu0
    %v277 = vadd.f32 %v86, %v276
    %v278 = vpop.f32.mrf.mxu0
    %279 = vmatprep.mubr.bf16.mxu0 0
    %280 = vmatmul.mubr.bf16.gmra.mxu0 %v138
    %v281 = vpop.f32.mrf.mxu0
    %v282 = vadd.f32 %v86, %v281
    %v283 = vpop.f32.mrf.mxu0
    %v284 = vpop.f32.mrf.mxu0
    %v285 = vadd.f32 %v86, %v284
    %v286 = vpop.f32.mrf.mxu0
    %287 = vmatprep.mubr.bf16.mxu0 0
    %288 = vmatmul.mubr.bf16.gmra.mxu0 %v141
    %v289 = vpop.f32.mrf.mxu0
    %v290 = vadd.f32 %v86, %v289
    %v291 = vpop.f32.mrf.mxu0
    %v292 = vpop.f32.mrf.mxu0
    %v293 = vadd.f32 %v86, %v292
    %v294 = vpop.f32.mrf.mxu0
    %295 = vmatprep.mubr.bf16.mxu0 0
    %296 = vmatmul.mubr.bf16.gmra.mxu0 %v144
    %v297 = vpop.f32.mrf.mxu0
    %v298 = vadd.f32 %v86, %v297
    %v299 = vpop.f32.mrf.mxu0
    %v300 = vpop.f32.mrf.mxu0
    %v301 = vadd.f32 %v86, %v300
    %v302 = vpop.f32.mrf.mxu0
    %303 = vmatprep.mubr.bf16.mxu0 0
    %304 = vmatmul.mubr.bf16.gmra.mxu0 %v147
    %v305 = vpop.f32.mrf.mxu0
    %v306 = vadd.f32 %v86, %v305
    %v307 = vpop.f32.mrf.mxu0
    %v308 = vpop.f32.mrf.mxu0
    %v309 = vadd.f32 %v86, %v308
    %v310 = vpop.f32.mrf.mxu0
    %311 = vmatprep.mubr.bf16.mxu0 0
    %312 = vmatmul.mubr.bf16.gmra.mxu0 %v150
    %v313 = vpop.f32.mrf.mxu0
    %v314 = vadd.f32 %v86, %v313
    %v315 = vpop.f32.mrf.mxu0
    %v316 = vpop.f32.mrf.mxu0
    %v317 = vadd.f32 %v86, %v316
    %v318 = vpop.f32.mrf.mxu0
    %319 = vdwg.mxu0
    %v320 = vmax.f32 %v194, 0.0
    %v321 = vmax.f32 %v197, 0.0
    %v322 = vmax.f32 %v202, 0.0
    %v323 = vmax.f32 %v205, 0.0
    %v324 = vmax.f32 %v210, 0.0
    %v325 = vmax.f32 %v213, 0.0
    %v326 = vmax.f32 %v218, 0.0
    %v327 = vmax.f32 %v221, 0.0
    %v328 = vmax.f32 %v226, 0.0
    %v329 = vmax.f32 %v229, 0.0
    %v330 = vmax.f32 %v234, 0.0
    %v331 = vmax.f32 %v237, 0.0
    %v332 = vmax.f32 %v242, 0.0
    %v333 = vmax.f32 %v245, 0.0
    %v334 = vmax.f32 %v250, 0.0
    %v335 = vmax.f32 %v253, 0.0
    %v336 = vmax.f32 %v258, 0.0
    %v337 = vmax.f32 %v261, 0.0
    %v338 = vmax.f32 %v266, 0.0
    %v339 = vmax.f32 %v269, 0.0
    %v340 = vmax.f32 %v274, 0.0
    %v341 = vmax.f32 %v277, 0.0
    %v342 = vmax.f32 %v282, 0.0
    %v343 = vmax.f32 %v285, 0.0
    %v344 = vmax.f32 %v290, 0.0
    %v345 = vmax.f32 %v293, 0.0
    %v346 = vmax.f32 %v298, 0.0
    %v347 = vmax.f32 %v301, 0.0
    %v348 = vmax.f32 %v306, 0.0
    %v349 = vmax.f32 %v309, 0.0
    %v350 = vmax.f32 %v314, 0.0
    %v351 = vmax.f32 %v317, 0.0
    %v352 = vpack.c.bf16 %v321, %v320
    %v353 = vpack.c.bf16 %v323, %v322
    %v354 = vpack.c.bf16 %v325, %v324
    %v355 = vpack.c.bf16 %v327, %v326
    %v356 = vpack.c.bf16 %v329, %v328
    %v357 = vpack.c.bf16 %v331, %v330
    %v358 = vpack.c.bf16 %v333, %v332
    %v359 = vpack.c.bf16 %v335, %v334
    %v360 = vpack.c.bf16 %v337, %v336
    %v361 = vpack.c.bf16 %v339, %v338
    %v362 = vpack.c.bf16 %v341, %v340
    %v363 = vpack.c.bf16 %v343, %v342
    %v364 = vpack.c.bf16 %v345, %v344
    %v365 = vpack.c.bf16 %v347, %v346
    %v366 = vpack.c.bf16 %v349, %v348
    %v367 = vpack.c.bf16 %v351, %v350
    %v368 = vld [vmem:[%s3] sm:$0xf]
    %v369 = vld [vmem:[%s3 + $0x4] sm:$0xf]
    %v370 = vld [vmem:[%s3 + $0x8] sm:$0xf]
    %v371 = vld [vmem:[%s3 + $0xc] sm:$0xf]
    %v372 = vld [vmem:[%s3 + $0x10] sm:$0xf]
    %v373 = vld [vmem:[%s3 + $0x14] sm:$0xf]
    %v374 = vld [vmem:[%s3 + $0x18] sm:$0xf]
    %v375 = vld [vmem:[%s3 + $0x1c] sm:$0xf]
    %v376 = vld [vmem:[%s3 + $0x20] sm:$0xf]
    %v377 = vld [vmem:[%s3 + $0x24] sm:$0xf]
    %v378 = vld [vmem:[%s3 + $0x28] sm:$0xf]
    %v379 = vld [vmem:[%s3 + $0x2c] sm:$0xf]
    %v380 = vld [vmem:[%s3 + $0x30] sm:$0xf]
    %v381 = vld [vmem:[%s3 + $0x34] sm:$0xf]
    %v382 = vld [vmem:[%s3 + $0x38] sm:$0xf]
    %v383 = vld [vmem:[%s3 + $0x3c] sm:$0xf]
    %v384 = vld [vmem:[%s4] sm:$0x1]
    %v386 = vlaneseq
    %v387 = vshrl.u32 %v386, 7
    %v388 = vsub.s32 0, %v387
    %v389 = vrot.slane %v384, %v388
    %v407 = vunpack.c.l.b16 %v368
    %v408 = vunpack.c.l.b16 %v369
    %v409 = vunpack.c.l.b16 %v370
    %v410 = vunpack.c.l.b16 %v371
    %v411 = vunpack.c.l.b16 %v372
    %v412 = vunpack.c.l.b16 %v373
    %v413 = vunpack.c.l.b16 %v374
    %v414 = vunpack.c.l.b16 %v375
    %v415 = vunpack.c.l.b16 %v376
    %v416 = vunpack.c.l.b16 %v377
    %v417 = vunpack.c.l.b16 %v378
    %v418 = vunpack.c.l.b16 %v379
    %v419 = vunpack.c.l.b16 %v380
    %v420 = vunpack.c.l.b16 %v381
    %v421 = vunpack.c.l.b16 %v382
    %v422 = vunpack.c.l.b16 %v383
    %v423 = vpack.c.b16 %v408, %v407
    %v424 = vpack.c.b16 %v410, %v409
    %v425 = vpack.c.b16 %v412, %v411
    %v426 = vpack.c.b16 %v414, %v413
    %v427 = vpack.c.b16 %v416, %v415
    %v428 = vpack.c.b16 %v418, %v417
    %v429 = vpack.c.b16 %v420, %v419
    %v430 = vpack.c.b16 %v422, %v421
    %439 = vmatprep.subr.bf16.mxu0 0
    %440 = vmatpush1.bf16.msra.mxu0 %v430
    %441 = vmatprep.subr.bf16.mxu0 0
    %442 = vmatpush1.bf16.msra.mxu0 %v429
    %443 = vmatprep.subr.bf16.mxu0 0
    %444 = vmatpush1.bf16.msra.mxu0 %v428
    %445 = vmatprep.subr.bf16.mxu0 0
    %446 = vmatpush1.bf16.msra.mxu0 %v427
    %447 = vmatprep.subr.bf16.mxu0 0
    %448 = vmatpush1.bf16.msra.mxu0 %v426
    %449 = vmatprep.subr.bf16.mxu0 0
    %450 = vmatpush1.bf16.msra.mxu0 %v425
    %451 = vmatprep.subr.bf16.mxu0 0
    %452 = vmatpush1.bf16.msra.mxu0 %v424
    %453 = vmatprep.subr.bf16.mxu0 0
    %454 = vmatpush1.bf16.msra.mxu0 %v423
    %455 = vmatprep.subr.bf16.mxu0 0
    %456 = vmatpush2.bf16.msra.mxu0 0
    %457 = vmatprep.subr.bf16.mxu0 0
    %458 = vmatpush2.bf16.msra.mxu0 0
    %459 = vmatprep.subr.bf16.mxu0 0
    %460 = vmatpush2.bf16.msra.mxu0 0
    %461 = vmatprep.subr.bf16.mxu0 0
    %462 = vmatpush2.bf16.msra.mxu0 0
    %463 = vmatprep.subr.bf16.mxu0 0
    %464 = vmatpush2.bf16.msra.mxu0 0
    %465 = vmatprep.subr.bf16.mxu0 0
    %466 = vmatpush2.bf16.msra.mxu0 0
    %467 = vmatprep.subr.bf16.mxu0 0
    %468 = vmatpush2.bf16.msra.mxu0 0
    %469 = vmatprep.subr.bf16.mxu0 0
    %470 = vmatpush2.bf16.msra.mxu0 0
    %471 = vmatprep.mubr.bf16.mxu0 0
    %472 = vmatmul.mubr.bf16.gmra.mxu0 %v352
    %v473 = vpop.f32.mrf.mxu0
    %v474 = vadd.f32 %v389, %v473
    %v475 = vpop.f32.mrf.mxu0
    %v476 = vpop.f32.mrf.mxu0
    %v477 = vadd.f32 %v389, %v476
    %v478 = vpop.f32.mrf.mxu0
    %479 = vmatprep.mubr.bf16.mxu0 0
    %480 = vmatmul.mubr.bf16.gmra.mxu0 %v353
    %v481 = vpop.f32.mrf.mxu0
    %v482 = vadd.f32 %v389, %v481
    %v483 = vpop.f32.mrf.mxu0
    %v484 = vpop.f32.mrf.mxu0
    %v485 = vadd.f32 %v389, %v484
    %v486 = vpop.f32.mrf.mxu0
    %487 = vmatprep.mubr.bf16.mxu0 0
    %488 = vmatmul.mubr.bf16.gmra.mxu0 %v354
    %v489 = vpop.f32.mrf.mxu0
    %v490 = vadd.f32 %v389, %v489
    %v491 = vpop.f32.mrf.mxu0
    %v492 = vpop.f32.mrf.mxu0
    %v493 = vadd.f32 %v389, %v492
    %v494 = vpop.f32.mrf.mxu0
    %495 = vmatprep.mubr.bf16.mxu0 0
    %496 = vmatmul.mubr.bf16.gmra.mxu0 %v355
    %v497 = vpop.f32.mrf.mxu0
    %v498 = vadd.f32 %v389, %v497
    %v499 = vpop.f32.mrf.mxu0
    %v500 = vpop.f32.mrf.mxu0
    %v501 = vadd.f32 %v389, %v500
    %v502 = vpop.f32.mrf.mxu0
    %503 = vmatprep.mubr.bf16.mxu0 0
    %504 = vmatmul.mubr.bf16.gmra.mxu0 %v356
    %v505 = vpop.f32.mrf.mxu0
    %v506 = vadd.f32 %v389, %v505
    %v507 = vpop.f32.mrf.mxu0
    %v508 = vpop.f32.mrf.mxu0
    %v509 = vadd.f32 %v389, %v508
    %v510 = vpop.f32.mrf.mxu0
    %511 = vmatprep.mubr.bf16.mxu0 0
    %512 = vmatmul.mubr.bf16.gmra.mxu0 %v357
    %v513 = vpop.f32.mrf.mxu0
    %v514 = vadd.f32 %v389, %v513
    %v515 = vpop.f32.mrf.mxu0
    %v516 = vpop.f32.mrf.mxu0
    %v517 = vadd.f32 %v389, %v516
    %v518 = vpop.f32.mrf.mxu0
    %519 = vmatprep.mubr.bf16.mxu0 0
    %520 = vmatmul.mubr.bf16.gmra.mxu0 %v358
    %v521 = vpop.f32.mrf.mxu0
    %v522 = vadd.f32 %v389, %v521
    %v523 = vpop.f32.mrf.mxu0
    %v524 = vpop.f32.mrf.mxu0
    %v525 = vadd.f32 %v389, %v524
    %v526 = vpop.f32.mrf.mxu0
    %527 = vmatprep.mubr.bf16.mxu0 0
    %528 = vmatmul.mubr.bf16.gmra.mxu0 %v359
    %v529 = vpop.f32.mrf.mxu0
    %v530 = vadd.f32 %v389, %v529
    %v531 = vpop.f32.mrf.mxu0
    %v532 = vpop.f32.mrf.mxu0
    %v533 = vadd.f32 %v389, %v532
    %v534 = vpop.f32.mrf.mxu0
    %535 = vmatprep.mubr.bf16.mxu0 0
    %536 = vmatmul.mubr.bf16.gmra.mxu0 %v360
    %v537 = vpop.f32.mrf.mxu0
    %v538 = vadd.f32 %v389, %v537
    %v539 = vpop.f32.mrf.mxu0
    %v540 = vpop.f32.mrf.mxu0
    %v541 = vadd.f32 %v389, %v540
    %v542 = vpop.f32.mrf.mxu0
    %543 = vmatprep.mubr.bf16.mxu0 0
    %544 = vmatmul.mubr.bf16.gmra.mxu0 %v361
    %v545 = vpop.f32.mrf.mxu0
    %v546 = vadd.f32 %v389, %v545
    %v547 = vpop.f32.mrf.mxu0
    %v548 = vpop.f32.mrf.mxu0
    %v549 = vadd.f32 %v389, %v548
    %v550 = vpop.f32.mrf.mxu0
    %551 = vmatprep.mubr.bf16.mxu0 0
    %552 = vmatmul.mubr.bf16.gmra.mxu0 %v362
    %v553 = vpop.f32.mrf.mxu0
    %v554 = vadd.f32 %v389, %v553
    %v555 = vpop.f32.mrf.mxu0
    %v556 = vpop.f32.mrf.mxu0
    %v557 = vadd.f32 %v389, %v556
    %v558 = vpop.f32.mrf.mxu0
    %559 = vmatprep.mubr.bf16.mxu0 0
    %560 = vmatmul.mubr.bf16.gmra.mxu0 %v363
    %v561 = vpop.f32.mrf.mxu0
    %v562 = vadd.f32 %v389, %v561
    %v563 = vpop.f32.mrf.mxu0
    %v564 = vpop.f32.mrf.mxu0
    %v565 = vadd.f32 %v389, %v564
    %v566 = vpop.f32.mrf.mxu0
    %567 = vmatprep.mubr.bf16.mxu0 0
    %568 = vmatmul.mubr.bf16.gmra.mxu0 %v364
    %v569 = vpop.f32.mrf.mxu0
    %v570 = vadd.f32 %v389, %v569
    %v571 = vpop.f32.mrf.mxu0
    %v572 = vpop.f32.mrf.mxu0
    %v573 = vadd.f32 %v389, %v572
    %v574 = vpop.f32.mrf.mxu0
    %575 = vmatprep.mubr.bf16.mxu0 0
    %576 = vmatmul.mubr.bf16.gmra.mxu0 %v365
    %v577 = vpop.f32.mrf.mxu0
    %v578 = vadd.f32 %v389, %v577
    %v579 = vpop.f32.mrf.mxu0
    %v580 = vpop.f32.mrf.mxu0
    %v581 = vadd.f32 %v389, %v580
    %v582 = vpop.f32.mrf.mxu0
    %583 = vmatprep.mubr.bf16.mxu0 0
    %584 = vmatmul.mubr.bf16.gmra.mxu0 %v366
    %v585 = vpop.f32.mrf.mxu0
    %v586 = vadd.f32 %v389, %v585
    %v587 = vpop.f32.mrf.mxu0
    %v588 = vpop.f32.mrf.mxu0
    %v589 = vadd.f32 %v389, %v588
    %v590 = vpop.f32.mrf.mxu0
    %591 = vmatprep.mubr.bf16.mxu0 0
    %592 = vmatmul.mubr.bf16.gmra.mxu0 %v367
    %v593 = vpop.f32.mrf.mxu0
    %v594 = vadd.f32 %v389, %v593
    %v595 = vpop.f32.mrf.mxu0
    %v596 = vpop.f32.mrf.mxu0
    %v597 = vadd.f32 %v389, %v596
    %v598 = vpop.f32.mrf.mxu0
    %599 = vdwg.mxu0
    %v600 = vmax.f32 %v474, 0.0
    %v601 = vmax.f32 %v477, 0.0
    %v602 = vmax.f32 %v482, 0.0
    %v603 = vmax.f32 %v485, 0.0
    %v604 = vmax.f32 %v490, 0.0
    %v605 = vmax.f32 %v493, 0.0
    %v606 = vmax.f32 %v498, 0.0
    %v607 = vmax.f32 %v501, 0.0
    %v608 = vmax.f32 %v506, 0.0
    %v609 = vmax.f32 %v509, 0.0
    %v610 = vmax.f32 %v514, 0.0
    %v611 = vmax.f32 %v517, 0.0
    %v612 = vmax.f32 %v522, 0.0
    %v613 = vmax.f32 %v525, 0.0
    %v614 = vmax.f32 %v530, 0.0
    %v615 = vmax.f32 %v533, 0.0
    %v616 = vmax.f32 %v538, 0.0
    %v617 = vmax.f32 %v541, 0.0
    %v618 = vmax.f32 %v546, 0.0
    %v619 = vmax.f32 %v549, 0.0
    %v620 = vmax.f32 %v554, 0.0
    %v621 = vmax.f32 %v557, 0.0
    %v622 = vmax.f32 %v562, 0.0
    %v623 = vmax.f32 %v565, 0.0
    %v624 = vmax.f32 %v570, 0.0
    %v625 = vmax.f32 %v573, 0.0
    %v626 = vmax.f32 %v578, 0.0
    %v627 = vmax.f32 %v581, 0.0
    %v628 = vmax.f32 %v586, 0.0
    %v629 = vmax.f32 %v589, 0.0
    %v630 = vmax.f32 %v594, 0.0
    %v631 = vmax.f32 %v597, 0.0
    %v632 = vld [vmem:[%s5] sm:$0xf]
    %v633 = vpack.c.bf16 %v601, %v600
    %v634 = vpack.c.bf16 %v603, %v602
    %v635 = vpack.c.bf16 %v605, %v604
    %v636 = vpack.c.bf16 %v607, %v606
    %v637 = vpack.c.bf16 %v609, %v608
    %v638 = vpack.c.bf16 %v611, %v610
    %v639 = vpack.c.bf16 %v613, %v612
    %v640 = vpack.c.bf16 %v615, %v614
    %v641 = vpack.c.bf16 %v617, %v616
    %v642 = vpack.c.bf16 %v619, %v618
    %v643 = vpack.c.bf16 %v621, %v620
    %v644 = vpack.c.bf16 %v623, %v622
    %v645 = vpack.c.bf16 %v625, %v624
    %v646 = vpack.c.bf16 %v627, %v626
    %v647 = vpack.c.bf16 %v629, %v628
    %v648 = vpack.c.bf16 %v631, %v630
    %v649 = vld [vmem:[%s6] sm:$0xff]
    %651 = vset.pattern.permute.xlu0 0
    %652 = vperm.xlu0 %651, %v649
    %v653 = vpop.permute.xlu0 %652
    %655 = vmatprep.subr.bf16.mxu0 0
    %656 = vmatpush1.bf16.xpose.msra.mxu0 %v640
    %657 = vmatprep.subr.bf16.mxu0 0
    %658 = vmatpush1.bf16.xpose.msra.mxu0 %v639
    %659 = vmatprep.subr.bf16.mxu0 0
    %660 = vmatpush1.bf16.xpose.msra.mxu0 %v638
    %661 = vmatprep.subr.bf16.mxu0 0
    %662 = vmatpush1.bf16.xpose.msra.mxu0 %v637
    %663 = vmatprep.subr.bf16.mxu0 0
    %664 = vmatpush1.bf16.xpose.msra.mxu0 %v636
    %665 = vmatprep.subr.bf16.mxu0 0
    %666 = vmatpush1.bf16.xpose.msra.mxu0 %v635
    %667 = vmatprep.subr.bf16.mxu0 0
    %668 = vmatpush1.bf16.xpose.msra.mxu0 %v634
    %669 = vmatprep.subr.bf16.mxu0 0
    %670 = vmatpush1.bf16.xpose.msra.mxu0 %v633
    %671 = vmatprep.subr.bf16.mxu0 0
    %672 = vmatpush2.bf16.xpose.msra.mxu0 %v648
    %673 = vmatprep.subr.bf16.mxu0 0
    %674 = vmatpush2.bf16.xpose.msra.mxu0 %v647
    %675 = vmatprep.subr.bf16.mxu0 0
    %676 = vmatpush2.bf16.xpose.msra.mxu0 %v646
    %677 = vmatprep.subr.bf16.mxu0 0
    %678 = vmatpush2.bf16.xpose.msra.mxu0 %v645
    %679 = vmatprep.subr.bf16.mxu0 0
    %680 = vmatpush2.bf16.xpose.msra.mxu0 %v644
    %681 = vmatprep.subr.bf16.mxu0 0
    %682 = vmatpush2.bf16.xpose.msra.mxu0 %v643
    %683 = vmatprep.subr.bf16.mxu0 0
    %684 = vmatpush2.bf16.xpose.msra.mxu0 %v642
    %685 = vmatprep.subr.bf16.mxu0 0
    %686 = vmatpush2.bf16.xpose.msra.mxu0 %v641
    %687 = vmatprep.mubr.bf16.mxu0 0
    %688 = vmatmul.mubr.bf16.gmra.mxu0 %v632
    %v689 = vpop.f32.mrf.mxu0
    %v690 = vadd.f32 %v653, %v689
    %v691 = vpop.f32.mrf.mxu0
    %v692 = vadd.f32 %v653, %v691
    %v693 = vpop.f32.mrf.mxu0
    %v694 = vpop.f32.mrf.mxu0
    %695 = vdwg.mxu0
    %696 = vst [vmem:[#allocation2] sm:$0xff] %v690
    %697 = vst [vmem:[#allocation2 + $0x8] sm:$0xff] %v692
    // Predicated region
    $region30: #{tpu_custom_call.1} parent=1 // pred_check
      _
    $region31: #{tpu_custom_call.1} parent=1 // pred_check_branch
      %699 = sbr.rel (0) target = $region33
    $region32: #{tpu_custom_call.1} parent=1 // pred_region
      %s701 = ssub.s32 256, 256
      %702 = vsyncadd [#allocation3], %s701
      %s704 = sshll.u32 [#allocation2], 4
      %s705 = int_to_ptr.vmem [resolvable:$true] %s704
      %707 = dma.vmem_to_hbm [thread:$0]  %s705, 256, %s7, [#allocation3]
    $region33: #{tpu_custom_call.1} parent=1 // pred_fallthru
      _
    // Predicated region
    $region34: #{tpu_custom_call.1} parent=1 // pred_check
      _
    $region35: #{tpu_custom_call.1} parent=1 // pred_check_branch
      %709 = sbr.rel (0) target = $region37
    $region36: #{tpu_custom_call.1} parent=1 // pred_region
      %710 = dma.done [#allocation3], 256
    $region37: #{tpu_custom_call.1} parent=1 // pred_fallthru
      _
    %711 = vsyncpa [#allocation3], 1

</llo_original>
